<compile_context>
chip_gen: v6e
topology: v6e:2x2x1
jax: 0.10.0
libtpu: 0.0.40
codegen_flags: <defaults>
</compile_context>

<pallas_src>
import jax
import jax.numpy as jnp
from jax.experimental import pallas as pl
from jax.experimental.pallas import tpu as pltpu

GAMMA = -0.1
ZETA = 1.1

LANE_W = 512        # lane-dense slab width (multiple of 128)
TILE_ROWS = 2048    # 2048 x 512 x 4 B = 4 MiB per array per grid step
VMEM_LIMIT = 40 * 1024 * 1024   # > 24 MiB double-buffered footprint, < v7x 64 MiB


def adaround_kernel(x_ref, out_ref, v_ref):
    x = x_ref[...]
    frac = x - jnp.floor(x)
    # init_V side effect:  V = -log((zeta - gamma) / (frac - gamma) - 1)
    v_ref[...] = -jnp.log((ZETA - GAMMA) / (frac - GAMMA) - 1.0)
    # recV == frac exactly (rectified-sigmoid round trip), so x_ada == x and the
    # straight-through forward value is simply round(x).
    out_ref[...] = jnp.round(x)


def _round_up(v, m):
    return ((v + m - 1) // m) * m


def adaround_forward(x):
    """x: any-shape float32 tensor (e.g. NCHW weights). Returns (x_ada, V)
    matching the PyTorch module's first forward call (rounded output + the
    initialized V parameter, same shape as x)."""
    orig_shape = x.shape
    n = x.size
    dtype = x.dtype
    flat = x.reshape(-1)

    # Lane-dense 2-D view with NO pad/unpad round trip in the common case:
    # pick the widest of {512, 256, 128} that divides the element count exactly.
    cols = next((c for c in (LANE_W, 256, 128) if n % c == 0), None)
    n_pad = 0
    if cols is None:
        # TODO(synk): rare fallback (element count not divisible by 128) —
        # costs one pad copy of x and a slice of each output.
        cols = 128
        n_pad = (-n) % cols
        flat = jnp.pad(flat, (0, n_pad))
    rows = (n + n_pad) // cols
    x2d = flat.reshape(rows, cols)

    # Row tiling: biggest generation-safe tile, but always >=2 grid steps when
    # the shape allows it so v7x's second TensorCore gets work (no-op v5e/v6e).
    if rows < 16:
        tr = rows                                   # cannot split rows (<2 blocks of >=8)
    else:
        n_tiles = max(2, pl.cdiv(rows, TILE_ROWS))
        tr = min(TILE_ROWS, _round_up(pl.cdiv(rows, n_tiles), 8))
    grid_r = pl.cdiv(rows, tr)                      # partial trailing block is fine

    # If rows alone cannot give 2 grid steps, split the lane axis instead
    # (each tile stays >=128 lanes wide, so stores remain unmasked/lane-dense).
    if grid_r >= 2 or cols % 256 != 0:
        tc = cols
    else:
        tc = cols // 2
    grid_c = pl.cdiv(cols, tc)

    n_elems = rows * cols
    cost = pl.CostEstimate(
        flops=6 * n_elems,            # floor/sub/sub/neg/round + divide VPU part
        transcendentals=2 * n_elems,  # reciprocal (from divide) + log on the EUP
        bytes_accessed=12 * n_elems,  # 4 B in + 8 B out per f32 element
    )

    out2d, v2d = pl.pallas_call(
        adaround_kernel,
        out_shape=(
            jax.ShapeDtypeStruct((rows, cols), dtype),
            jax.ShapeDtypeStruct((rows, cols), dtype),
        ),
        grid=(grid_r, grid_c),
        in_specs=[pl.BlockSpec((tr, tc), lambda i, j: (i, j))],
        out_specs=(
            pl.BlockSpec((tr, tc), lambda i, j: (i, j)),
            pl.BlockSpec((tr, tc), lambda i, j: (i, j)),
        ),
        input_output_aliases={0: 0},   # donate the throwaway x2d temp to `out`
        compiler_params=pltpu.CompilerParams(
            dimension_semantics=("parallel", "parallel"),
            vmem_limit_bytes=VMEM_LIMIT,
        ),
        cost_estimate=cost,
    )(x2d)

    if n_pad:
        out = out2d.reshape(-1)[:n].reshape(orig_shape)
        v = v2d.reshape(-1)[:n].reshape(orig_shape)
    else:
        out = out2d.reshape(orig_shape)
        v = v2d.reshape(orig_shape)
    return out, v


def adaround_ref(x):
    """Pure-JAX reference reproducing the full PyTorch math (no simplification)."""
    x_floor = jnp.floor(x)
    frac = x - x_floor
    v = -jnp.log((ZETA - GAMMA) / (frac - GAMMA) - 1.0)
    rec_v = jnp.clip(jax.nn.sigmoid(v) * (ZETA - GAMMA) + GAMMA, 0.0, 1.0)
    x_ada = x_floor + rec_v
    return jnp.round(x_ada), v


if __name__ == "__main__":
    key = jax.random.PRNGKey(0)
    # Input as if already divided by scale / shifted by zero-point.
    x = jax.random.uniform(key, (2, 4, 16, 16), dtype=jnp.float32,
                           minval=-8.0, maxval=8.0)

    fwd = jax.jit(adaround_forward)
    out, v = fwd(x)
    out = jax.block_until_ready(out)
    v = jax.block_until_ready(v)

    out_ref, v_ref = adaround_ref(x)
    assert out.shape == x.shape and v.shape == x.shape
    assert jnp.allclose(out, out_ref, atol=1e-5), "output mismatch vs reference"
    assert jnp.allclose(v, v_ref, atol=1e-4), "V mismatch vs reference"

    print("KERNEL_OK")
</pallas_src>

<mosaic_0001>
module attributes {stable_mosaic.version = 11 : i64} {
  func.func @adaround_kernel(%arg0: i32, %arg1: i32, %arg2: memref<4x256xf32, #tpu.memory_space<vmem>>, %arg3: memref<4x256xf32, #tpu.memory_space<vmem>>, %arg4: memref<4x256xf32, #tpu.memory_space<vmem>>) attributes {dimension_semantics = [#tpu.dimension_semantics<parallel>, #tpu.dimension_semantics<parallel>], iteration_bounds = array<i64: 1, 2>, scalar_prefetch = 0 : i64, scratch_operands = 0 : i64, tpu.core_type = #tpu.core_type<tc>, window_params = [{transform_indices = @transform_0, window_bounds = array<i64: 4, 256>}, {transform_indices = @transform_1, window_bounds = array<i64: 4, 256>}, {transform_indices = @transform_2, window_bounds = array<i64: 4, 256>}]} {
    %c0 = arith.constant 0 : index
    %c0_0 = arith.constant 0 : index
    %0 = vector.load %arg2[%c0, %c0_0] : memref<4x256xf32, #tpu.memory_space<vmem>>, vector<4x256xf32>
    %1 = math.floor %0 : vector<4x256xf32>
    %2 = arith.subf %0, %1 : vector<4x256xf32>
    %cst = arith.constant -1.000000e-01 : f32
    %3 = vector.broadcast %cst : f32 to vector<4x256xf32>
    %4 = arith.subf %2, %3 : vector<4x256xf32>
    %cst_1 = arith.constant 1.200000e+00 : f32
    %5 = vector.broadcast %cst_1 : f32 to vector<4x256xf32>
    %6 = arith.divf %5, %4 : vector<4x256xf32>
    %cst_2 = arith.constant 1.000000e+00 : f32
    %7 = vector.broadcast %cst_2 : f32 to vector<4x256xf32>
    %8 = arith.subf %6, %7 : vector<4x256xf32>
    %9 = math.log %8 : vector<4x256xf32>
    %cst_3 = arith.constant 0.000000e+00 : f32
    %10 = vector.broadcast %cst_3 : f32 to vector<4x256xf32>
    %11 = arith.subf %10, %9 : vector<4x256xf32>
    %c0_4 = arith.constant 0 : index
    %c0_5 = arith.constant 0 : index
    %12 = vector.load %arg4[%c0_4, %c0_5] : memref<4x256xf32, #tpu.memory_space<vmem>>, vector<4x256xf32>
    tpu.vector_store %arg4[%c0_4, %c0_5], %11 {strides = array<i32>} : memref<4x256xf32, #tpu.memory_space<vmem>>, vector<4x256xf32>,
    %13 = math.roundeven %0 : vector<4x256xf32>
    %c0_6 = arith.constant 0 : index
    %c0_7 = arith.constant 0 : index
    %14 = vector.load %arg3[%c0_6, %c0_7] : memref<4x256xf32, #tpu.memory_space<vmem>>, vector<4x256xf32>
    tpu.vector_store %arg3[%c0_6, %c0_7], %13 {strides = array<i32>} : memref<4x256xf32, #tpu.memory_space<vmem>>, vector<4x256xf32>,
    return
  }
  func.func @transform_0(%arg0: i32, %arg1: i32) -> (i32, i32) {
    %c0_i32 = arith.constant 0 : i32
    return %arg0, %arg1 : i32, i32
  }
  func.func @transform_1(%arg0: i32, %arg1: i32) -> (i32, i32) {
    %c0_i32 = arith.constant 0 : i32
    return %arg0, %arg1 : i32, i32
  }
  func.func @transform_2(%arg0: i32, %arg1: i32) -> (i32, i32) {
    %c0_i32 = arith.constant 0 : i32
    return %arg0, %arg1 : i32, i32
  }
}

</mosaic_0001>

<llo_original>
// kernel: adaround_forward.1
$region0: #{adaround_forward.1}
  #allocation0 [shape = 'u32[]', space=smem, size = 0x4, offset = 0x4, fixed_abs, tag = 'smem constant byte address 0x4 - core index']
  #allocation1 [shape = 'u32[144,128]{1,0:T(1,128)}', space=vmem, size = 0x12000, scoped, tag = 'internal scratch']
  %s0 = inlined_call_operand.vmem [shape: f32[4,512], index: 0, kind: input, shape index: {}, may-alias: {0,1}]
  %s1 = inlined_call_operand.vmem [shape: f32[4,512], index: 1, kind: output, shape index: {0}, may-alias: {0,1}]
  %s2 = inlined_call_operand.vmem [shape: f32[4,512], index: 2, kind: output, shape index: {1}]
  %3 = xla_tuple %s1, %s2
  %s4 = sld [smem:[#allocation0]]
  $region45: #{adaround_forward.1} parent=0
    _
  %s6 = ssub.s32 1, %s4
  %s7 = scalar_select 0, %s6, %s4
  loop: start=0, step=1, limit=4
  $region2: #{adaround_forward.1} parent=0 // loop_pre_header
    _
  $region3: #{adaround_forward.1} parent=0 // loop_header
    %s9 = sphi 0, %s13
    %p10 = scmp.ge.s32.totalorder %s9, 4
    %s16 = sphi 0, %s28
    %s17 = sphi 0, %s24
    %s18 = sphi 0, %s16
    %s19 = sphi 0, %s17
    %s20 = sphi 0, %s18
    %s21 = sphi 0, %s19
    %s33 = sphi 0, %s35
    %s36 = sphi 0, %s33
    %s37 = sphi 0, %s36
    %s53 = sphi 0, %s37
    %s61 = sphi 0, %s63
    %s64 = sphi 0, %s61
    %s65 = sphi 0, %s64
    %s81 = sphi 0, %s65
    %s89 = sphi 0, %s91
    %s92 = sphi 0, %s89
    %s93 = sphi 0, %s92
    %s109 = sphi 0, %s93
  $region4: #{adaround_forward.1} parent=0 // loop_header_branch
    %12 = sbr.rel (%p10) target = $region8
  $region5: #{adaround_forward.1} parent=0 // loop_body
    %s14 = ssub.s32 %s9, 1
    %s15 = ssub.s32 %s9, 2
    %s22 = sadd.s32 1, %s17
    %p23 = scmp.ge.s32.totalorder %s22, 2
    %s24 = scalar_select %p23, 0, %s22
    %s25 = sadd.s32 1, %s16
    %s26 = scalar_select %p23, %s25, %s16
    %p27 = scmp.ge.s32.totalorder %s26, 1
    %s28 = scalar_select %p27, 0, %s26
    %s29 = ssub.s32 %s16, %s28
    %s30 = ssub.s32 %s17, %s24
    %s31 = sor.u32 %s29, %s30
    %p32 = scmp.eq.s32.totalorder %s31, 0
    %s34 = sadd.s32 %s33, 1
    %s35 = scalar_select %p32, %s33, %s34
    %p38 = pneg %p32
    %p39 = scmp.eq.s32.totalorder %s9, 1
    %p40 = por %p38, %p39
    %p41 = scmp.ne.s32.totalorder %s33, %s36
    %p42 = scmp.eq.s32.totalorder %s9, 0
    %p43 = por %p41, %p42
    %p44 = scmp.ne.s32.totalorder %s33, %s36
    %p45 = scmp.eq.s32.totalorder %s14, 1
    %p46 = por %p44, %p45
    %p47 = scmp.ne.s32.totalorder %s36, %s37
    %p48 = scmp.eq.s32.totalorder %s14, 0
    %p49 = por %p47, %p48
    %p50 = scmp.ne.s32.totalorder %s36, %s37
    %p51 = scmp.eq.s32.totalorder %s15, 1
    %p52 = por %p50, %p51
    %p54 = scmp.ne.s32.totalorder %s37, %s53
    %p55 = scmp.eq.s32.totalorder %s15, 0
    %p56 = por %p54, %p55
    %s57 = ssub.s32 %s16, %s28
    %s58 = ssub.s32 %s17, %s24
    %s59 = sor.u32 %s57, %s58
    %p60 = scmp.eq.s32.totalorder %s59, 0
    %s62 = sadd.s32 %s61, 1
    %s63 = scalar_select %p60, %s61, %s62
    %p66 = pneg %p60
    %p67 = scmp.eq.s32.totalorder %s9, 1
    %p68 = por %p66, %p67
    %p69 = scmp.ne.s32.totalorder %s61, %s64
    %p70 = scmp.eq.s32.totalorder %s9, 0
    %p71 = por %p69, %p70
    %p72 = scmp.ne.s32.totalorder %s61, %s64
    %p73 = scmp.eq.s32.totalorder %s14, 1
    %p74 = por %p72, %p73
    %p75 = scmp.ne.s32.totalorder %s64, %s65
    %p76 = scmp.eq.s32.totalorder %s14, 0
    %p77 = por %p75, %p76
    %p78 = scmp.ne.s32.totalorder %s64, %s65
    %p79 = scmp.eq.s32.totalorder %s15, 1
    %p80 = por %p78, %p79
    %p82 = scmp.ne.s32.totalorder %s65, %s81
    %p83 = scmp.eq.s32.totalorder %s15, 0
    %p84 = por %p82, %p83
    %s85 = ssub.s32 %s16, %s28
    %s86 = ssub.s32 %s17, %s24
    %s87 = sor.u32 %s85, %s86
    %p88 = scmp.eq.s32.totalorder %s87, 0
    %s90 = sadd.s32 %s89, 1
    %s91 = scalar_select %p88, %s89, %s90
    %p94 = pneg %p88
    %p95 = scmp.eq.s32.totalorder %s9, 1
    %p96 = por %p94, %p95
    %p97 = scmp.ne.s32.totalorder %s89, %s92
    %p98 = scmp.eq.s32.totalorder %s9, 0
    %p99 = por %p97, %p98
    %p100 = scmp.ne.s32.totalorder %s89, %s92
    %p101 = scmp.eq.s32.totalorder %s14, 1
    %p102 = por %p100, %p101
    %p103 = scmp.ne.s32.totalorder %s92, %s93
    %p104 = scmp.eq.s32.totalorder %s14, 0
    %p105 = por %p103, %p104
    %p106 = scmp.ne.s32.totalorder %s92, %s93
    %p107 = scmp.eq.s32.totalorder %s15, 1
    %p108 = por %p106, %p107
    %p110 = scmp.ne.s32.totalorder %s93, %s109
    %p111 = scmp.eq.s32.totalorder %s15, 0
    %p112 = por %p110, %p111
    %p113 = scmp.le.s32.totalorder 1, %s9
    %p114 = scmp.lt.s32.totalorder %s9, 3
    %p115 = pnand %p113, %p114
    %p116 = pneg %p115
    // Predicated region
    $region9: #{adaround_forward.1} parent=5 // pred_check
      _
    $region10: #{adaround_forward.1} parent=5 // pred_check_branch
      %118 = sbr.rel (%p115) target = $region12
    $region11: #{adaround_forward.1} parent=5 // pred_region
      %s119 = ssub.s32 %s9, 1
    $region12: #{adaround_forward.1} parent=5 // pred_fallthru
      _
    %p120 = scmp.lt.s32.totalorder %s9, 2
    // Predicated region
    $region13: #{adaround_forward.1} parent=5 // pred_check
      %p121 = pneg %p120
    $region14: #{adaround_forward.1} parent=5 // pred_check_branch
      %123 = sbr.rel (%p121) target = $region16
    $region15: #{adaround_forward.1} parent=5 // pred_region
      // Predicated region
      $region17: #{adaround_forward.1} parent=15 // pred_check
        %p124 = pneg %p43
      $region18: #{adaround_forward.1} parent=15 // pred_check_branch
        %126 = sbr.rel (%p124) target = $region20
      $region19: #{adaround_forward.1} parent=15 // pred_region
        %s127 = smul.u32 2, %s17
        %p128 = scmp.lt.s32.totalorder %s16, 0
        %s129 = scalar_select %p128, %s16, 0
        %p130 = scmp.lt.s32.totalorder %s127, 3
        %s131 = scalar_select %p130, %s127, 3
        %s132 = smul.addr %s129, 4
        %s133 = sadd.s32 %s131, %s132
        %s134 = smul.addr %s133, 4
        %s135 = scalar_lea.vmem %s0, %s134
        %s136 = smul.u32 2, %s17
      $region20: #{adaround_forward.1} parent=15 // pred_fallthru
        _
    $region16: #{adaround_forward.1} parent=5 // pred_fallthru
      _
    %p137 = scmp.le.s32.totalorder 1, %s9
    %p138 = scmp.lt.s32.totalorder %s9, 3
    %p139 = pnand %p137, %p138
    %p140 = pneg %p139
    // Predicated region
    $region21: #{adaround_forward.1} parent=5 // pred_check
      _
    $region22: #{adaround_forward.1} parent=5 // pred_check_branch
      %142 = sbr.rel (%p139) target = $region24
    $region23: #{adaround_forward.1} parent=5 // pred_region
      %s143 = ssub.s32 %s9, 1
      %s144 = smul.u32 2, %s19
      %p145 = scmp.lt.s32.totalorder %s18, 0
      %s146 = scalar_select %p145, %s18, 0
      %p147 = scmp.lt.s32.totalorder %s144, 3
      %s148 = scalar_select %p147, %s144, 3
      %s149 = smul.addr %s146, 4
      %s150 = sadd.s32 %s148, %s149
      %s151 = smul.addr %s150, 4
      %s152 = scalar_lea.vmem %s0, %s151
      %p153 = pneg %p49
      %p154 = pneg %p46
      %p155 = pneg %p77
      %p156 = pneg %p74
      %s157 = smul.u32 2, %s19
      %p158 = scmp.lt.s32.totalorder %s18, 0
      %s159 = scalar_select %p158, %s18, 0
      %p160 = scmp.lt.s32.totalorder %s157, 3
      %s161 = scalar_select %p160, %s157, 3
      %s162 = smul.addr %s159, 4
      %s163 = sadd.s32 %s161, %s162
      %s164 = smul.addr %s163, 4
      %s165 = scalar_lea.vmem %s1, %s164
      %p166 = pneg %p105
      %p167 = pneg %p102
      %s168 = smul.u32 2, %s19
      %p169 = scmp.lt.s32.totalorder %s18, 0
      %s170 = scalar_select %p169, %s18, 0
      %p171 = scmp.lt.s32.totalorder %s168, 3
      %s172 = scalar_select %p171, %s168, 3
      %s173 = smul.addr %s170, 4
      %s174 = sadd.s32 %s172, %s173
      %s175 = smul.addr %s174, 4
      %s176 = scalar_lea.vmem %s2, %s175
      %s177 = smul.u32 2, %s19
      %p178 = scmp.lt.s32.totalorder %s18, 0
      %s179 = scalar_select %p178, %s18, 0
      %p180 = scmp.lt.s32.totalorder %s177, 3
      %s181 = scalar_select %p180, %s177, 3
      %s182 = smul.addr %s179, 4
      %s183 = sadd.s32 %s181, %s182
      %s184 = smul.addr %s183, 4
      %s185 = scalar_lea.vmem %s0, %s184
      %s186 = smul.u32 2, %s19
      %s187 = smul.u32 2, %s19
      %p188 = scmp.lt.s32.totalorder %s18, 0
      %s189 = scalar_select %p188, %s18, 0
      %p190 = scmp.lt.s32.totalorder %s187, 3
      %s191 = scalar_select %p190, %s187, 3
      %s192 = smul.addr %s189, 4
      %s193 = sadd.s32 %s191, %s192
      %s194 = smul.addr %s193, 4
      %s195 = scalar_lea.vmem %s1, %s194
      %s196 = smul.u32 2, %s19
      %s197 = smul.u32 2, %s19
      %p198 = scmp.lt.s32.totalorder %s18, 0
      %s199 = scalar_select %p198, %s18, 0
      %p200 = scmp.lt.s32.totalorder %s197, 3
      %s201 = scalar_select %p200, %s197, 3
      %s202 = smul.addr %s199, 4
      %s203 = sadd.s32 %s201, %s202
      %s204 = smul.addr %s203, 4
      %s205 = scalar_lea.vmem %s2, %s204
      %s206 = smul.u32 2, %s19
      %v207 = vld [vmem:[%s185] sm:$0xff]
      %v208 = vfloor.f32 %v207
      %v209 = vsub.f32 %v207, %v208
      %v210 = vsub.f32 %v209, -0.1
      %v211 = vrcp.pop %v210
      %v212 = vmul.f32 1.2, %v211
      %v213 = vsub.f32 %v212, 1.0
      %v214 = vlog2.pop %v213
      %v215 = vmul.f32 %v214, 0.6931472
      %v216 = vsub.f32 0.0, %v215
      %217 = vst [vmem:[%s205] sm:$0xff] %v216
      %v218 = vround.ne.pseudo %v207
      %219 = vst [vmem:[%s195] sm:$0xff] %v218
      %s220 = smul.u32 2, %s19
      %p221 = scmp.lt.s32.totalorder %s18, 0
      %s222 = scalar_select %p221, %s18, 0
      %p223 = scmp.lt.s32.totalorder %s220, 3
      %s224 = scalar_select %p223, %s220, 3
      %s225 = smul.addr %s222, 4
      %s226 = sadd.s32 %s224, %s225
      %s227 = smul.addr %s226, 4
      %s228 = scalar_lea.vmem %s1, %s227
      %s229 = smul.u32 2, %s19
      %p230 = scmp.lt.s32.totalorder %s18, 0
      %s231 = scalar_select %p230, %s18, 0
      %p232 = scmp.lt.s32.totalorder %s229, 3
      %s233 = scalar_select %p232, %s229, 3
      %s234 = smul.addr %s231, 4
      %s235 = sadd.s32 %s233, %s234
      %s236 = smul.addr %s235, 4
      %s237 = scalar_lea.vmem %s2, %s236
      // Predicated region
      $region25: #{adaround_forward.1} parent=23 // pred_check
        %p238 = pneg %p74
      $region26: #{adaround_forward.1} parent=23 // pred_check_branch
        %240 = sbr.rel (%p238) target = $region28
      $region27: #{adaround_forward.1} parent=23 // pred_region
        %s241 = smul.u32 2, %s19
      $region28: #{adaround_forward.1} parent=23 // pred_fallthru
        _
      // Predicated region
      $region29: #{adaround_forward.1} parent=23 // pred_check
        %p242 = pneg %p102
      $region30: #{adaround_forward.1} parent=23 // pred_check_branch
        %244 = sbr.rel (%p242) target = $region32
      $region31: #{adaround_forward.1} parent=23 // pred_region
        %s245 = smul.u32 2, %s19
      $region32: #{adaround_forward.1} parent=23 // pred_fallthru
        _
    $region24: #{adaround_forward.1} parent=5 // pred_fallthru
      _
    %p246 = scmp.le.s32.totalorder 2, %s9
    // Predicated region
    $region33: #{adaround_forward.1} parent=5 // pred_check
      %p247 = pneg %p246
    $region34: #{adaround_forward.1} parent=5 // pred_check_branch
      %249 = sbr.rel (%p247) target = $region36
    $region35: #{adaround_forward.1} parent=5 // pred_region
      %s250 = ssub.s32 %s9, 2
      // Predicated region
      $region37: #{adaround_forward.1} parent=35 // pred_check
        %p251 = pneg %p80
      $region38: #{adaround_forward.1} parent=35 // pred_check_branch
        %253 = sbr.rel (%p251) target = $region40
      $region39: #{adaround_forward.1} parent=35 // pred_region
        %s254 = smul.u32 2, %s21
        %p255 = scmp.lt.s32.totalorder %s20, 0
        %s256 = scalar_select %p255, %s20, 0
        %p257 = scmp.lt.s32.totalorder %s254, 3
        %s258 = scalar_select %p257, %s254, 3
        %s259 = smul.addr %s256, 4
        %s260 = sadd.s32 %s258, %s259
        %s261 = smul.addr %s260, 4
        %s262 = scalar_lea.vmem %s1, %s261
      $region40: #{adaround_forward.1} parent=35 // pred_fallthru
        _
      // Predicated region
      $region41: #{adaround_forward.1} parent=35 // pred_check
        %p263 = pneg %p108
      $region42: #{adaround_forward.1} parent=35 // pred_check_branch
        %265 = sbr.rel (%p263) target = $region44
      $region43: #{adaround_forward.1} parent=35 // pred_region
        %s266 = smul.u32 2, %s21
        %p267 = scmp.lt.s32.totalorder %s20, 0
        %s268 = scalar_select %p267, %s20, 0
        %p269 = scmp.lt.s32.totalorder %s266, 3
        %s270 = scalar_select %p269, %s266, 3
        %s271 = smul.addr %s268, 4
        %s272 = sadd.s32 %s270, %s271
        %s273 = smul.addr %s272, 4
        %s274 = scalar_lea.vmem %s2, %s273
      $region44: #{adaround_forward.1} parent=35 // pred_fallthru
        _
    $region36: #{adaround_forward.1} parent=5 // pred_fallthru
      _
  $region6: #{adaround_forward.1} parent=0 // loop_footer
    %s13 = sadd.s32 1, %s9
  $region7: #{adaround_forward.1} parent=0 // loop_footer_branch
    %8 = sbr.rel target = $region3
  $region8: #{adaround_forward.1} parent=0 // loop_exit
    _

</llo_original>
